<compile_context>
chip_gen: v5e
topology: v5e:2x2
jax: 0.10.0
libtpu: 0.0.40
codegen_flags: <defaults>
</compile_context>

<pallas_src>
import functools

import jax
import jax.numpy as jnp
from jax.experimental import pallas as pl
from jax.experimental.pallas import tpu as pltpu


def _nw_kernel(w_ref, q_ref, k_ref, v_ref, out_ref):
    # w_ref: (1,1) scalar in SMEM; q_ref: (tn,1); k_ref/v_ref: (tn,m); out_ref: (tn,1)
    w = w_ref[0, 0]
    s = -0.5 * w * w                              # scalar, hoisted out of (tn, m) math

    q = q_ref[...].astype(jnp.float32)            # (tn, 1)
    k = k_ref[...].astype(jnp.float32)            # (tn, m)  (bf16 inputs cast here)
    v = v_ref[...].astype(jnp.float32)            # (tn, m)

    d = q - k                                     # broadcast queries across m
    logits = s * (d * d)                          # (tn, m), all <= 0

    # numerically-stable softmax along the key axis, fused with the weighted sum:
    # out = sum(exp(l - max) * v) / sum(exp(l - max))
    m_max = jnp.max(logits, axis=1, keepdims=True)
    e = jnp.exp(logits - m_max)                   # (tn, m)  -- EUP exp stream
    num = jnp.sum(e * v, axis=1, keepdims=True)   # (tn, 1)
    den = jnp.sum(e, axis=1, keepdims=True)       # (tn, 1)

    out_ref[...] = (num * pl.reciprocal(den, approx=False)).astype(out_ref.dtype)


def _round_up(x, mult):
    return ((x + mult - 1) // mult) * mult


def _choose_tile_n(n, m, itemsize, vmem_budget_bytes=24 * 1024 * 1024):
    """Largest row tile (multiple of 8) s.t. double-buffered keys+values fit VMEM."""
    # keys + values, 2 pipeline buffers each, itemsize bytes per element
    bytes_per_row = 2 * 2 * m * itemsize
    max_rows = max(8, vmem_budget_bytes // max(bytes_per_row, 1))
    tile = min(1024, max_rows, _round_up(n, 8))
    return max(8, (tile // 8) * 8)


@functools.partial(jax.jit, static_argnames=())
def nw_kernel_regression(queries, keys, values, w):
    """queries: (n,), keys/values: (n, m) (f32 or bf16), w: (1,). Returns (n,) f32."""
    n, m = keys.shape
    itemsize = max(jnp.dtype(keys.dtype).itemsize, jnp.dtype(values.dtype).itemsize)
    tile_n = _choose_tile_n(n, m, itemsize)
    n_pad = _round_up(n, tile_n)

    q2 = queries.reshape(n, 1)
    k2 = keys
    v2 = values
    if n_pad != n:
        pad = ((0, n_pad - n), (0, 0))
        q2 = jnp.pad(q2, pad)
        k2 = jnp.pad(k2, pad)
        v2 = jnp.pad(v2, pad)
    w2 = w.reshape(1, 1).astype(jnp.float32)

    grid = (n_pad // tile_n,)

    out = pl.pallas_call(
        _nw_kernel,
        out_shape=jax.ShapeDtypeStruct((n_pad, 1), jnp.float32),
        grid=grid,
        in_specs=[
            pl.BlockSpec(memory_space=pltpu.MemorySpace.SMEM),      # w (scalar)
            pl.BlockSpec((tile_n, 1), lambda i: (i, 0)),            # queries
            pl.BlockSpec((tile_n, m), lambda i: (i, 0)),            # keys
            pl.BlockSpec((tile_n, m), lambda i: (i, 0)),            # values
        ],
        out_specs=pl.BlockSpec((tile_n, 1), lambda i: (i, 0)),
        compiler_params=pltpu.CompilerParams(
            dimension_semantics=("parallel",),
        ),
    )(w2, q2, k2, v2)
    return out[:n].reshape(-1)


def nw_reference(queries, keys, values, w):
    q = queries.astype(jnp.float32)[:, None]
    k = keys.astype(jnp.float32)
    v = values.astype(jnp.float32)
    logits = -((q - k) * w[0]) ** 2 / 2.0
    attn = jax.nn.softmax(logits, axis=1)
    return jnp.sum(attn * v, axis=1)


if __name__ == "__main__":
    key = jax.random.PRNGKey(0)
    k_q, k_k, k_v, k_w = jax.random.split(key, 4)

    # small shapes consistent with the module: n query points, m key/value pairs each
    n, m = 8, 128
    queries = jax.random.uniform(k_q, (n,), dtype=jnp.float32) * 5.0
    keys = jax.random.uniform(k_k, (n, m), dtype=jnp.float32) * 5.0
    values = jax.random.normal(k_v, (n, m), dtype=jnp.float32)
    w = jax.random.uniform(k_w, (1,), dtype=jnp.float32)  # mirrors torch.rand((1,))

    out = nw_kernel_regression(queries, keys, values, w)
    out = jax.block_until_ready(out)
    ref = nw_reference(queries, keys, values, w)
    assert out.shape == (n,)
    assert jnp.allclose(out, ref, atol=1e-5, rtol=1e-5), (out, ref)

    # second case: non-multiple-of-8 rows (exercises padding path) + bf16 keys/values
    n2, m2 = 50, 64
    k_q2, k_k2, k_v2 = jax.random.split(k_q, 3)
    queries2 = jax.random.uniform(k_q2, (n2,), dtype=jnp.float32) * 5.0
    keys2 = (jax.random.uniform(k_k2, (n2, m2), dtype=jnp.float32) * 5.0).astype(jnp.bfloat16)
    values2 = jax.random.normal(k_v2, (n2, m2), dtype=jnp.float32).astype(jnp.bfloat16)

    out2 = nw_kernel_regression(queries2, keys2, values2, w)
    out2 = jax.block_until_ready(out2)
    ref2 = nw_reference(queries2, keys2, values2, w)
    assert out2.shape == (n2,)
    assert jnp.allclose(out2, ref2, atol=2e-2, rtol=2e-2), (out2, ref2)

    print("KERNEL_OK")
</pallas_src>

<mosaic_0001>
module attributes {stable_mosaic.version = 11 : i64} {
  func.func @_nw_kernel(%arg0: i32, %arg1: memref<1x1xf32, #tpu.memory_space<smem>>, %arg2: memref<8x1xf32, #tpu.memory_space<vmem>>, %arg3: memref<8x128xf32, #tpu.memory_space<vmem>>, %arg4: memref<8x128xf32, #tpu.memory_space<vmem>>, %arg5: memref<8x1xf32, #tpu.memory_space<vmem>>) attributes {dimension_semantics = [#tpu.dimension_semantics<parallel>], iteration_bounds = array<i64: 1>, scalar_prefetch = 0 : i64, scratch_operands = 0 : i64, tpu.core_type = #tpu.core_type<tc>, window_params = [{transform_indices = @transform_0, window_bounds = array<i64: 1, 1>}, {transform_indices = @transform_1, window_bounds = array<i64: 8, 1>}, {transform_indices = @transform_2, window_bounds = array<i64: 8, 128>}, {transform_indices = @transform_3, window_bounds = array<i64: 8, 128>}, {transform_indices = @transform_4, window_bounds = array<i64: 8, 1>}]} {
    %c0 = arith.constant 0 : index
    %c0_0 = arith.constant 0 : index
    %0 = memref.load %arg1[%c0, %c0_0] : memref<1x1xf32, #tpu.memory_space<smem>>
    %cst = arith.constant -5.000000e-01 : f32
    %1 = arith.mulf %cst, %0 : f32
    %2 = arith.mulf %1, %0 : f32
    %c0_1 = arith.constant 0 : index
    %c0_2 = arith.constant 0 : index
    %3 = vector.load %arg2[%c0_1, %c0_2] : memref<8x1xf32, #tpu.memory_space<vmem>>, vector<8x1xf32>
    %c0_3 = arith.constant 0 : index
    %c0_4 = arith.constant 0 : index
    %4 = vector.load %arg3[%c0_3, %c0_4] : memref<8x128xf32, #tpu.memory_space<vmem>>, vector<8x128xf32>
    %c0_5 = arith.constant 0 : index
    %c0_6 = arith.constant 0 : index
    %5 = vector.load %arg4[%c0_5, %c0_6] : memref<8x128xf32, #tpu.memory_space<vmem>>, vector<8x128xf32>
    %6 = vector.broadcast %3 : vector<8x1xf32> to vector<8x128xf32>
    %7 = arith.subf %6, %4 : vector<8x128xf32>
    %8 = arith.mulf %7, %7 : vector<8x128xf32>
    %9 = vector.broadcast %2 : f32 to vector<8x128xf32>
    %10 = arith.mulf %9, %8 : vector<8x128xf32>
    %cst_7 = arith.constant dense<0xFF800000> : vector<8xf32>
    %11 = vector.multi_reduction <maximumf>, %10, %cst_7 [1] : vector<8x128xf32> to vector<8xf32>
    %12 = vector.shape_cast %11 : vector<8xf32> to vector<8x1xf32>
    %13 = vector.broadcast %12 : vector<8x1xf32> to vector<8x128xf32>
    %14 = arith.subf %10, %13 : vector<8x128xf32>
    %15 = math.exp %14 : vector<8x128xf32>
    %16 = arith.mulf %15, %5 : vector<8x128xf32>
    %cst_8 = arith.constant dense<0.000000e+00> : vector<8xf32>
    %17 = vector.multi_reduction <add>, %16, %cst_8 [1] : vector<8x128xf32> to vector<8xf32>
    %18 = vector.shape_cast %17 : vector<8xf32> to vector<8x1xf32>
    %cst_9 = arith.constant dense<0.000000e+00> : vector<8xf32>
    %19 = vector.multi_reduction <add>, %15, %cst_9 [1] : vector<8x128xf32> to vector<8xf32>
    %20 = vector.shape_cast %19 : vector<8xf32> to vector<8x1xf32>
    %21 = tpu.reciprocal %20 : vector<8x1xf32> -> vector<8x1xf32>
    %22 = arith.mulf %18, %21 : vector<8x1xf32>
    %c0_10 = arith.constant 0 : index
    %c0_11 = arith.constant 0 : index
    %23 = vector.load %arg5[%c0_10, %c0_11] : memref<8x1xf32, #tpu.memory_space<vmem>>, vector<8x1xf32>
    tpu.vector_store %arg5[%c0_10, %c0_11], %22 {strides = array<i32>} : memref<8x1xf32, #tpu.memory_space<vmem>>, vector<8x1xf32>,
    return
  }
  func.func @transform_0(%arg0: i32) -> (i32, i32) {
    %c0_i32 = arith.constant 0 : i32
    %c0_i32_0 = arith.constant 0 : i32
    %c0_i32_1 = arith.constant 0 : i32
    return %c0_i32, %c0_i32_0 : i32, i32
  }
  func.func @transform_1(%arg0: i32) -> (i32, i32) {
    %c0_i32 = arith.constant 0 : i32
    %c0_i32_0 = arith.constant 0 : i32
    return %arg0, %c0_i32 : i32, i32
  }
  func.func @transform_2(%arg0: i32) -> (i32, i32) {
    %c0_i32 = arith.constant 0 : i32
    %c0_i32_0 = arith.constant 0 : i32
    return %arg0, %c0_i32 : i32, i32
  }
  func.func @transform_3(%arg0: i32) -> (i32, i32) {
    %c0_i32 = arith.constant 0 : i32
    %c0_i32_0 = arith.constant 0 : i32
    return %arg0, %c0_i32 : i32, i32
  }
  func.func @transform_4(%arg0: i32) -> (i32, i32) {
    %c0_i32 = arith.constant 0 : i32
    %c0_i32_0 = arith.constant 0 : i32
    return %arg0, %c0_i32 : i32, i32
  }
}

</mosaic_0001>

<llo_original>
// kernel: nw_kernel_regression.1
$region0: #{nw_kernel_regression.1}
  #allocation0 [shape = 'u32[]', space=smem, size = 0x4, offset = 0x4, fixed_abs, tag = 'smem constant byte address 0x4 - core index']
  #allocation1 [shape = 'u32[72,128]{1,0:T(1,128)}', space=vmem, size = 0x9000, scoped, tag = 'internal scratch']
  #allocation2 [shape = 'f32[1,1]{1,0:T(1,128)S(6)}', space=smem, size = 0x200, scoped, tag = 'scoped memory for nw_kernel_regression.1']
  %s0 = inlined_call_operand.<no memory space> [shape: f32[1,1], index: 0, kind: input, shape index: {}]
  %s1 = inlined_call_operand.vmem [shape: f32[8,1], index: 1, kind: input, shape index: {}]
  %s2 = inlined_call_operand.vmem [shape: f32[8,128], index: 2, kind: input, shape index: {}]
  %s3 = inlined_call_operand.hbm [shape: f32[8,128], index: 3, kind: input, shape index: {}]
  %s4 = inlined_call_operand.vmem [shape: f32[8,1], index: 4, kind: output, shape index: {}]
  %s5 = sld [smem:[#allocation0]]
  $region30: #{nw_kernel_regression.1} parent=0
    _
  %s7 = ssub.s32 1, %s5
  %s8 = scalar_select 0, %s7, %s5
  %9 = sst [smem:[#allocation2]] %s0
  $region1: #{nw_kernel_regression.1} parent=0
    #allocation3 [shape = 'u8[4096]{0}', space=vmem, size = 0x1000, scoped, tag = 'input window, operand 3, single buffered']
    #allocation4 [shape = 's32[1]{0}', space=sflag, size = 0x4, scoped, tag = 'scoped memory for nw_kernel_regression.1']
    %10 = vsyncpa [#allocation4], 0
    // Predicated region
    $region2: #{nw_kernel_regression.1} parent=1 // pred_check
      _
    $region3: #{nw_kernel_regression.1} parent=1 // pred_check_branch
      %12 = sbr.rel (0) target = $region5
    $region4: #{nw_kernel_regression.1} parent=1 // pred_region
      _
    $region5: #{nw_kernel_regression.1} parent=1 // pred_fallthru
      _
    // Predicated region
    $region6: #{nw_kernel_regression.1} parent=1 // pred_check
      _
    $region7: #{nw_kernel_regression.1} parent=1 // pred_check_branch
      %14 = sbr.rel (0) target = $region9
    $region8: #{nw_kernel_regression.1} parent=1 // pred_region
      _
    $region9: #{nw_kernel_regression.1} parent=1 // pred_fallthru
      _
    // Predicated region
    $region10: #{nw_kernel_regression.1} parent=1 // pred_check
      _
    $region11: #{nw_kernel_regression.1} parent=1 // pred_check_branch
      %16 = sbr.rel (0) target = $region13
    $region12: #{nw_kernel_regression.1} parent=1 // pred_region
      _
    $region13: #{nw_kernel_regression.1} parent=1 // pred_fallthru
      _
    // Predicated region
    $region14: #{nw_kernel_regression.1} parent=1 // pred_check
      _
    $region15: #{nw_kernel_regression.1} parent=1 // pred_check_branch
      %18 = sbr.rel (0) target = $region17
    $region16: #{nw_kernel_regression.1} parent=1 // pred_region
      %20 = vsyncadd [#allocation4], 0
      %s22 = sshll.u32 %s3, 4
      %s23 = int_to_ptr.hbm [resolvable:$true] %s22
      %s24 = sshll.u32 [#allocation3], 4
      %s25 = int_to_ptr.vmem [resolvable:$true] %s24
      %27 = dma.hbm_to_vmem [thread:$0]  %s23, 128, %s25, [#allocation4]
    $region17: #{nw_kernel_regression.1} parent=1 // pred_fallthru
      _
    // Predicated region
    $region18: #{nw_kernel_regression.1} parent=1 // pred_check
      _
    $region19: #{nw_kernel_regression.1} parent=1 // pred_check_branch
      %29 = sbr.rel (0) target = $region21
    $region20: #{nw_kernel_regression.1} parent=1 // pred_region
      %31 = dma.done [#allocation4], 128
    $region21: #{nw_kernel_regression.1} parent=1 // pred_fallthru
      _
    %s32 = sld [smem:[#allocation2]]
    %s33 = smul.f32 %s32, -0.5
    %s34 = smul.f32 %s33, %s32
    %v35 = vld [vmem:[%s1] sm:$0xff]
    %v36 = vld [vmem:[%s2] sm:$0xff]
    %v37 = vld [vmem:[#allocation3] sm:$0xff]
    %39 = vset.pattern.permute.xlu0 0
    %40 = vperm.xlu0 %39, %v35
    %v41 = vpop.permute.xlu0 %40
    %v43 = vsub.f32 %v41, %v36
    %v44 = vmul.f32 %v43, %v43
    %v45 = vstv %s34
    %v46 = vmul.f32 %v45, %v44
    %47 = vmax.xlane.f32.xlu0 %v46
    %v48 = vpop.xlane.xlu0 %47
    %v49 = vsub.f32 %v46, %v48
    %v50 = vmul.f32 %v49, 1.442695
    %v51 = vpow.pop %v50
    %v52 = vmul.f32 %v51, %v37
    %53 = vadd.xlane.f32.xlu0 %v52
    %v54 = vpop.xlane.xlu0 %53
    %55 = vadd.xlane.f32.xlu0 %v51
    %v56 = vpop.xlane.xlu0 %55
    %v57 = vrcp.pop %v56
    %v58 = vmul.f32 %v56, %v57
    %v59 = vsub.f32 1.0, %v58
    %v60 = vmul.f32 %v57, %v59
    %v61 = vadd.f32 %v57, %v60
    %vm62 = vweird.f32 %v56
    %vm63 = vweird.f32 %v57
    %vm64 = vmor %vm62, %vm63
    %v65 = vsel %vm64, %v57, %v61
    %v66 = vand.u32 2147483647, %v56
    %vm67 = vcmp.eq.f32.partialorder %v66, 8.507059e+37
    %v68 = vand.u32 %v56, 2147483648
    %v69 = vor.u32 1.1754944e-38, %v68
    %v70 = vsel %vm67, %v69, %v65
    %v71 = vmul.f32 %v54, %v70
    %vm72 = vcmask 7168
    %73 = vst.msk [vmem:[%s4] sm:$0xff] %vm72, %v71
    // Predicated region
    $region22: #{nw_kernel_regression.1} parent=1 // pred_check
      _
    $region23: #{nw_kernel_regression.1} parent=1 // pred_check_branch
      %75 = sbr.rel (0) target = $region25
    $region24: #{nw_kernel_regression.1} parent=1 // pred_region
      _
    $region25: #{nw_kernel_regression.1} parent=1 // pred_fallthru
      _
    // Predicated region
    $region26: #{nw_kernel_regression.1} parent=1 // pred_check
      _
    $region27: #{nw_kernel_regression.1} parent=1 // pred_check_branch
      %77 = sbr.rel (0) target = $region29
    $region28: #{nw_kernel_regression.1} parent=1 // pred_region
      _
    $region29: #{nw_kernel_regression.1} parent=1 // pred_fallthru
      _
    %78 = vsyncpa [#allocation4], 1

</llo_original>
